<compile_context>
chip_gen: v7x
topology: tpu7x:2x2x1
jax: 0.10.0
libtpu: 0.0.40
codegen_flags: <defaults>
</compile_context>

<pallas_src>
import functools
import math

import jax
import jax.numpy as jnp
from jax.experimental import pallas as pl
from jax.experimental.pallas import tpu as pltpu


def _round_up(n, m):
    return ((n + m - 1) // m) * m


def rnn_kernel(x_ref, whx_t_ref, whh_t_ref, bh_ref, wph_t_ref, bp_ref, out_ref,
               *, seq_len, batch):
    """Whole RNN unrolled inside one kernel invocation.

    x_ref     : (S*B, 1)  time-major inputs, row t*B + b == x[b, t]
    whx_t_ref : (1, Hp)   Whx.T, zero-padded to Hp lanes
    whh_t_ref : (Hp, Hp)  Whh.T, zero-padded
    bh_ref    : (1, Hp)   zero-padded
    wph_t_ref : (Hp, Cp)  Wph.T, zero-padded
    bp_ref    : (1, Cp)   zero-padded
    out_ref   : (B, Cp)   lane-dense output (sliced to C in the wrapper)
    """
    # --- off the recurrence critical path: input projection + hidden bias for
    # all timesteps at once (input_dim == 1 -> outer product, pure VPU work).
    xproj = x_ref[...] * whx_t_ref[...] + bh_ref[...]          # (S*B, Hp)

    whh_t = whh_t_ref[...]                                     # (Hp, Hp), loaded once
    hp = whh_t.shape[0]

    # --- recurrence: h lives in vregs; loop fully unrolled (S, B are static),
    # so every xproj slice is a static, sublane-aligned (B, Hp) chunk and the
    # per-step chain is just one MXU matmul + add + tanh.
    h = jnp.zeros((batch, hp), jnp.float32)
    for t in range(seq_len):
        xp = xproj[t * batch:(t + 1) * batch, :]
        h = jnp.tanh(xp + jnp.dot(h, whh_t, preferred_element_type=jnp.float32))

    # --- output projection; (B, Cp) store is lane-dense (no masked vst).
    out_ref[...] = (jnp.dot(h, wph_t_ref[...], preferred_element_type=jnp.float32)
                    + bp_ref[...])


def vanilla_rnn_forward(x, whx, whh, bh, wph, bp):
    """x: (batch, seq_length) float32. Returns logits (batch, num_classes)."""
    B, S = x.shape
    H = whh.shape[0]
    C = wph.shape[0]

    # Layout plumbing only: transposes + zero-padding to lane-dense widths.
    Hp = _round_up(H, 128)
    Cp = _round_up(C, 128)

    x_col = jnp.transpose(x, (1, 0)).reshape(S * B, 1)                   # (S*B, 1) time-major
    whx_row = jnp.zeros((1, Hp), jnp.float32).at[0, :H].set(whx[:, 0])   # Whx.T padded
    whh_t = jnp.zeros((Hp, Hp), jnp.float32).at[:H, :H].set(whh.T)
    bh2 = jnp.zeros((1, Hp), jnp.float32).at[0, :H].set(bh)
    wph_t = jnp.zeros((Hp, Cp), jnp.float32).at[:H, :C].set(wph.T)
    bp2 = jnp.zeros((1, Cp), jnp.float32).at[0, :C].set(bp)

    # Single kernel invocation: everything fits comfortably in VMEM at these
    # shapes.  (If batch were scaled up, a batch-block grid with
    # dimension_semantics=("parallel",) would split it across v7x's two TCs.)
    out_padded = pl.pallas_call(
        functools.partial(rnn_kernel, seq_len=S, batch=B),
        out_shape=jax.ShapeDtypeStruct((B, Cp), jnp.float32),
        in_specs=[pl.BlockSpec(memory_space=pltpu.MemorySpace.VMEM)] * 6,
        out_specs=pl.BlockSpec(memory_space=pltpu.MemorySpace.VMEM),
    )(x_col, whx_row, whh_t, bh2, wph_t, bp2)

    return out_padded[:, :C]


def xavier_uniform(key, shape):
    fan_out, fan_in = shape
    bound = math.sqrt(6.0 / (fan_in + fan_out))
    return jax.random.uniform(key, shape, jnp.float32, minval=-bound, maxval=bound)


def reference_forward(x, whx, whh, bh, wph, bp):
    """Plain-JAX mirror of the PyTorch forward (for correctness check)."""
    B = x.shape[0]
    H = whh.shape[0]
    h = jnp.zeros((B, H), jnp.float32)
    for t in range(x.shape[1]):
        x_t = x[:, t][:, None]                             # (B, 1)
        h = jnp.tanh(x_t @ whx.T + h @ whh.T + bh)
    return h @ wph.T + bp


if __name__ == "__main__":
    # Small shapes consistent with the module's forward: scalar input per timestep.
    batch = 8
    seq_length = 8
    input_dim = 1
    num_hidden = 32
    num_classes = 10

    key = jax.random.PRNGKey(0)
    k_x, k_wph, k_whh, k_whx = jax.random.split(key, 4)

    # Deterministic parameter init (mirrors nn.init.xavier_uniform_ / zeros).
    wph = xavier_uniform(k_wph, (num_classes, num_hidden))
    whh = xavier_uniform(k_whh, (num_hidden, num_hidden))
    whx = xavier_uniform(k_whx, (num_hidden, input_dim))
    bh = jnp.zeros((num_hidden,), jnp.float32)
    bp = jnp.zeros((num_classes,), jnp.float32)

    # Inputs: one scalar per (batch, timestep), e.g. digits as floats.
    x = jax.random.randint(k_x, (batch, seq_length), 0, 10).astype(jnp.float32)

    out = vanilla_rnn_forward(x, whx, whh, bh, wph, bp)
    out = jax.block_until_ready(out)

    ref = reference_forward(x, whx, whh, bh, wph, bp)
    assert out.shape == (batch, num_classes)
    assert jnp.allclose(out, ref, atol=1e-5, rtol=1e-5), "mismatch vs reference"

    print("KERNEL_OK")
</pallas_src>

<mosaic_0001>
module attributes {stable_mosaic.version = 11 : i64} {
  func.func @rnn_kernel(%arg0: memref<64x1xf32, #tpu.memory_space<vmem>>, %arg1: memref<1x128xf32, #tpu.memory_space<vmem>>, %arg2: memref<128x128xf32, #tpu.memory_space<vmem>>, %arg3: memref<1x128xf32, #tpu.memory_space<vmem>>, %arg4: memref<128x128xf32, #tpu.memory_space<vmem>>, %arg5: memref<1x128xf32, #tpu.memory_space<vmem>>, %arg6: memref<8x128xf32, #tpu.memory_space<vmem>>) attributes {dimension_semantics = [], scalar_prefetch = 0 : i64, scratch_operands = 0 : i64, tpu.core_type = #tpu.core_type<tc>} {
    %c0 = arith.constant 0 : index
    %c0_0 = arith.constant 0 : index
    %0 = vector.load %arg0[%c0, %c0_0] : memref<64x1xf32, #tpu.memory_space<vmem>>, vector<64x1xf32>
    %c0_1 = arith.constant 0 : index
    %c0_2 = arith.constant 0 : index
    %1 = vector.load %arg1[%c0_1, %c0_2] : memref<1x128xf32, #tpu.memory_space<vmem>>, vector<1x128xf32>
    %2 = vector.broadcast %0 : vector<64x1xf32> to vector<64x128xf32>
    %3 = vector.broadcast %1 : vector<1x128xf32> to vector<64x128xf32>
    %4 = arith.mulf %2, %3 : vector<64x128xf32>
    %c0_3 = arith.constant 0 : index
    %c0_4 = arith.constant 0 : index
    %5 = vector.load %arg3[%c0_3, %c0_4] : memref<1x128xf32, #tpu.memory_space<vmem>>, vector<1x128xf32>
    %6 = vector.broadcast %5 : vector<1x128xf32> to vector<64x128xf32>
    %7 = arith.addf %4, %6 : vector<64x128xf32>
    %c0_5 = arith.constant 0 : index
    %c0_6 = arith.constant 0 : index
    %8 = vector.load %arg2[%c0_5, %c0_6] : memref<128x128xf32, #tpu.memory_space<vmem>>, vector<128x128xf32>
    %cst = arith.constant 0.000000e+00 : f32
    %9 = vector.broadcast %cst : f32 to vector<8x128xf32>
    %10 = vector.extract_strided_slice %7 {offsets = [0, 0], sizes = [8, 128], strides = [1, 1]} : vector<64x128xf32> to vector<8x128xf32>
    %cst_7 = arith.constant dense<0.000000e+00> : vector<8x128xf32>
    %11 = tpu.matmul %9, %8, %cst_7 {dimension_numbers = #tpu.dot_dimension_numbers<[1], [0], [0], [1], [0, 0, 1, 1], [], []>} : vector<8x128xf32>, vector<128x128xf32>, vector<8x128xf32> -> vector<8x128xf32>
    %12 = arith.addf %10, %11 : vector<8x128xf32>
    %13 = math.tanh %12 : vector<8x128xf32>
    %14 = vector.extract_strided_slice %7 {offsets = [8, 0], sizes = [8, 128], strides = [1, 1]} : vector<64x128xf32> to vector<8x128xf32>
    %cst_8 = arith.constant dense<0.000000e+00> : vector<8x128xf32>
    %15 = tpu.matmul %13, %8, %cst_8 {dimension_numbers = #tpu.dot_dimension_numbers<[1], [0], [0], [1], [0, 0, 1, 1], [], []>} : vector<8x128xf32>, vector<128x128xf32>, vector<8x128xf32> -> vector<8x128xf32>
    %16 = arith.addf %14, %15 : vector<8x128xf32>
    %17 = math.tanh %16 : vector<8x128xf32>
    %18 = vector.extract_strided_slice %7 {offsets = [16, 0], sizes = [8, 128], strides = [1, 1]} : vector<64x128xf32> to vector<8x128xf32>
    %cst_9 = arith.constant dense<0.000000e+00> : vector<8x128xf32>
    %19 = tpu.matmul %17, %8, %cst_9 {dimension_numbers = #tpu.dot_dimension_numbers<[1], [0], [0], [1], [0, 0, 1, 1], [], []>} : vector<8x128xf32>, vector<128x128xf32>, vector<8x128xf32> -> vector<8x128xf32>
    %20 = arith.addf %18, %19 : vector<8x128xf32>
    %21 = math.tanh %20 : vector<8x128xf32>
    %22 = vector.extract_strided_slice %7 {offsets = [24, 0], sizes = [8, 128], strides = [1, 1]} : vector<64x128xf32> to vector<8x128xf32>
    %cst_10 = arith.constant dense<0.000000e+00> : vector<8x128xf32>
    %23 = tpu.matmul %21, %8, %cst_10 {dimension_numbers = #tpu.dot_dimension_numbers<[1], [0], [0], [1], [0, 0, 1, 1], [], []>} : vector<8x128xf32>, vector<128x128xf32>, vector<8x128xf32> -> vector<8x128xf32>
    %24 = arith.addf %22, %23 : vector<8x128xf32>
    %25 = math.tanh %24 : vector<8x128xf32>
    %26 = vector.extract_strided_slice %7 {offsets = [32, 0], sizes = [8, 128], strides = [1, 1]} : vector<64x128xf32> to vector<8x128xf32>
    %cst_11 = arith.constant dense<0.000000e+00> : vector<8x128xf32>
    %27 = tpu.matmul %25, %8, %cst_11 {dimension_numbers = #tpu.dot_dimension_numbers<[1], [0], [0], [1], [0, 0, 1, 1], [], []>} : vector<8x128xf32>, vector<128x128xf32>, vector<8x128xf32> -> vector<8x128xf32>
    %28 = arith.addf %26, %27 : vector<8x128xf32>
    %29 = math.tanh %28 : vector<8x128xf32>
    %30 = vector.extract_strided_slice %7 {offsets = [40, 0], sizes = [8, 128], strides = [1, 1]} : vector<64x128xf32> to vector<8x128xf32>
    %cst_12 = arith.constant dense<0.000000e+00> : vector<8x128xf32>
    %31 = tpu.matmul %29, %8, %cst_12 {dimension_numbers = #tpu.dot_dimension_numbers<[1], [0], [0], [1], [0, 0, 1, 1], [], []>} : vector<8x128xf32>, vector<128x128xf32>, vector<8x128xf32> -> vector<8x128xf32>
    %32 = arith.addf %30, %31 : vector<8x128xf32>
    %33 = math.tanh %32 : vector<8x128xf32>
    %34 = vector.extract_strided_slice %7 {offsets = [48, 0], sizes = [8, 128], strides = [1, 1]} : vector<64x128xf32> to vector<8x128xf32>
    %cst_13 = arith.constant dense<0.000000e+00> : vector<8x128xf32>
    %35 = tpu.matmul %33, %8, %cst_13 {dimension_numbers = #tpu.dot_dimension_numbers<[1], [0], [0], [1], [0, 0, 1, 1], [], []>} : vector<8x128xf32>, vector<128x128xf32>, vector<8x128xf32> -> vector<8x128xf32>
    %36 = arith.addf %34, %35 : vector<8x128xf32>
    %37 = math.tanh %36 : vector<8x128xf32>
    %38 = vector.extract_strided_slice %7 {offsets = [56, 0], sizes = [8, 128], strides = [1, 1]} : vector<64x128xf32> to vector<8x128xf32>
    %cst_14 = arith.constant dense<0.000000e+00> : vector<8x128xf32>
    %39 = tpu.matmul %37, %8, %cst_14 {dimension_numbers = #tpu.dot_dimension_numbers<[1], [0], [0], [1], [0, 0, 1, 1], [], []>} : vector<8x128xf32>, vector<128x128xf32>, vector<8x128xf32> -> vector<8x128xf32>
    %40 = arith.addf %38, %39 : vector<8x128xf32>
    %41 = math.tanh %40 : vector<8x128xf32>
    %c0_15 = arith.constant 0 : index
    %c0_16 = arith.constant 0 : index
    %42 = vector.load %arg4[%c0_15, %c0_16] : memref<128x128xf32, #tpu.memory_space<vmem>>, vector<128x128xf32>
    %cst_17 = arith.constant dense<0.000000e+00> : vector<8x128xf32>
    %43 = tpu.matmul %41, %42, %cst_17 {dimension_numbers = #tpu.dot_dimension_numbers<[1], [0], [0], [1], [0, 0, 1, 1], [], []>} : vector<8x128xf32>, vector<128x128xf32>, vector<8x128xf32> -> vector<8x128xf32>
    %c0_18 = arith.constant 0 : index
    %c0_19 = arith.constant 0 : index
    %44 = vector.load %arg5[%c0_18, %c0_19] : memref<1x128xf32, #tpu.memory_space<vmem>>, vector<1x128xf32>
    %45 = vector.broadcast %44 : vector<1x128xf32> to vector<8x128xf32>
    %46 = arith.addf %43, %45 : vector<8x128xf32>
    %c0_20 = arith.constant 0 : index
    %c0_21 = arith.constant 0 : index
    %47 = vector.load %arg6[%c0_20, %c0_21] : memref<8x128xf32, #tpu.memory_space<vmem>>, vector<8x128xf32>
    tpu.vector_store %arg6[%c0_20, %c0_21], %46 {strides = array<i32>} : memref<8x128xf32, #tpu.memory_space<vmem>>, vector<8x128xf32>,
    return
  }
}

</mosaic_0001>

<llo_original>
// kernel: tpu_custom_call.1
$region0: #{tpu_custom_call.1}
  #allocation0 [shape = 'u32[]', space=smem, size = 0x4, offset = 0x4, fixed_abs, tag = 'smem constant byte address 0x4 - core index']
  #allocation1 [shape = 'u32[144,128]{1,0:T(1,128)}', space=vmem, size = 0x12000, scoped, tag = 'internal scratch']
  %s0 = inlined_call_operand.vmem [shape: f32[64,1], index: 0, kind: input, shape index: {}]
  %s1 = inlined_call_operand.vmem [shape: f32[1,128], index: 1, kind: input, shape index: {}]
  %s2 = inlined_call_operand.hbm [shape: f32[128,128], index: 2, kind: input, shape index: {}]
  %s3 = inlined_call_operand.vmem [shape: f32[1,128], index: 3, kind: input, shape index: {}]
  %s4 = inlined_call_operand.hbm [shape: f32[128,128], index: 4, kind: input, shape index: {}]
  %s5 = inlined_call_operand.vmem [shape: f32[1,128], index: 5, kind: input, shape index: {}]
  %s6 = inlined_call_operand.hbm [shape: f32[8,128], index: 6, kind: output, shape index: {}]
  %s7 = sld [smem:[#allocation0]]
  $region42: #{tpu_custom_call.1} parent=0
    _
  %s9 = ssub.s32 1, %s7
  %s10 = scalar_select 0, %s9, %s7
  $region1: #{tpu_custom_call.1} parent=0
    #allocation2 [shape = 'u8[65536]{0}', space=vmem, size = 0x10000, scoped, tag = 'input window, operand 2, single buffered']
    #allocation3 [shape = 's32[1]{0}', space=sflag, size = 0x4, scoped, tag = 'scoped memory for tpu_custom_call.1']
    #allocation4 [shape = 's32[1]{0}', space=sflag, size = 0x4, scoped, tag = 'scoped memory for tpu_custom_call.1']
    #allocation5 [shape = 'u8[65536]{0}', space=vmem, size = 0x10000, scoped, tag = 'input window, operand 4, single buffered']
    #allocation6 [shape = 's32[1]{0}', space=sflag, size = 0x4, scoped, tag = 'scoped memory for tpu_custom_call.1']
    #allocation7 [shape = 'u8[4096]{0}', space=vmem, size = 0x1000, scoped, tag = 'output window, operand 0, single buffered']
    %11 = vsyncpa [#allocation3], 0
    %12 = vsyncpa [#allocation6], 0
    %13 = vsyncpa [#allocation4], 0
    // Predicated region
    $region2: #{tpu_custom_call.1} parent=1 // pred_check
      _
    $region3: #{tpu_custom_call.1} parent=1 // pred_check_branch
      %15 = sbr.rel (0) target = $region5
    $region4: #{tpu_custom_call.1} parent=1 // pred_region
      _
    $region5: #{tpu_custom_call.1} parent=1 // pred_fallthru
      _
    // Predicated region
    $region6: #{tpu_custom_call.1} parent=1 // pred_check
      _
    $region7: #{tpu_custom_call.1} parent=1 // pred_check_branch
      %17 = sbr.rel (0) target = $region9
    $region8: #{tpu_custom_call.1} parent=1 // pred_region
      _
    $region9: #{tpu_custom_call.1} parent=1 // pred_fallthru
      _
    // Predicated region
    $region10: #{tpu_custom_call.1} parent=1 // pred_check
      _
    $region11: #{tpu_custom_call.1} parent=1 // pred_check_branch
      %19 = sbr.rel (0) target = $region13
    $region12: #{tpu_custom_call.1} parent=1 // pred_region
      %s21 = ssub.s32 2048, 2048
      %22 = vsyncadd [#allocation3], %s21
      %s23 = sshll.u32 [#allocation2], 4
      %s24 = int_to_ptr.vmem [resolvable:$true] %s23
      %29 = dma.hbm_to_vmem [thread:$0]  %s2, 2048, %s24, [#allocation3], 128, 128, 8
    $region13: #{tpu_custom_call.1} parent=1 // pred_fallthru
      _
    // Predicated region
    $region14: #{tpu_custom_call.1} parent=1 // pred_check
      _
    $region15: #{tpu_custom_call.1} parent=1 // pred_check_branch
      %31 = sbr.rel (0) target = $region17
    $region16: #{tpu_custom_call.1} parent=1 // pred_region
      _
    $region17: #{tpu_custom_call.1} parent=1 // pred_fallthru
      _
    // Predicated region
    $region18: #{tpu_custom_call.1} parent=1 // pred_check
      _
    $region19: #{tpu_custom_call.1} parent=1 // pred_check_branch
      %33 = sbr.rel (0) target = $region21
    $region20: #{tpu_custom_call.1} parent=1 // pred_region
      %s35 = ssub.s32 2048, 2048
      %36 = vsyncadd [#allocation6], %s35
      %s37 = sshll.u32 [#allocation5], 4
      %s38 = int_to_ptr.vmem [resolvable:$true] %s37
      %43 = dma.hbm_to_vmem [thread:$0]  %s4, 2048, %s38, [#allocation6], 128, 128, 8
    $region21: #{tpu_custom_call.1} parent=1 // pred_fallthru
      _
    // Predicated region
    $region22: #{tpu_custom_call.1} parent=1 // pred_check
      _
    $region23: #{tpu_custom_call.1} parent=1 // pred_check_branch
      %45 = sbr.rel (0) target = $region25
    $region24: #{tpu_custom_call.1} parent=1 // pred_region
      _
    $region25: #{tpu_custom_call.1} parent=1 // pred_fallthru
      _
    // Predicated region
    $region26: #{tpu_custom_call.1} parent=1 // pred_check
      _
    $region27: #{tpu_custom_call.1} parent=1 // pred_check_branch
      %47 = sbr.rel (0) target = $region29
    $region28: #{tpu_custom_call.1} parent=1 // pred_region
      %48 = dma.done [#allocation3], 2048
    $region29: #{tpu_custom_call.1} parent=1 // pred_fallthru
      _
    // Predicated region
    $region30: #{tpu_custom_call.1} parent=1 // pred_check
      _
    $region31: #{tpu_custom_call.1} parent=1 // pred_check_branch
      %50 = sbr.rel (0) target = $region33
    $region32: #{tpu_custom_call.1} parent=1 // pred_region
      %51 = dma.done [#allocation6], 2048
    $region33: #{tpu_custom_call.1} parent=1 // pred_fallthru
      _
    %v52 = vld [vmem:[%s0] sm:$0xff]
    %v53 = vld [vmem:[%s0 + $0x8] sm:$0xff]
    %v54 = vld [vmem:[%s0 + $0x10] sm:$0xff]
    %v55 = vld [vmem:[%s0 + $0x18] sm:$0xff]
    %v56 = vld [vmem:[%s0 + $0x20] sm:$0xff]
    %v57 = vld [vmem:[%s0 + $0x28] sm:$0xff]
    %v58 = vld [vmem:[%s0 + $0x30] sm:$0xff]
    %v59 = vld [vmem:[%s0 + $0x38] sm:$0xff]
    %v60 = vld [vmem:[%s1] sm:$0x1]
    %62 = vset.pattern.permute.xlu0 0
    %63 = vperm.xlu0 %62, %v52
    %v64 = vpop.permute.xlu0 %63
    %67 = vset.pattern.permute.xlu0 0
    %68 = vperm.xlu0 %67, %v53
    %v69 = vpop.permute.xlu0 %68
    %72 = vset.pattern.permute.xlu0 0
    %73 = vperm.xlu0 %72, %v54
    %v74 = vpop.permute.xlu0 %73
    %77 = vset.pattern.permute.xlu0 0
    %78 = vperm.xlu0 %77, %v55
    %v79 = vpop.permute.xlu0 %78
    %82 = vset.pattern.permute.xlu0 0
    %83 = vperm.xlu0 %82, %v56
    %v84 = vpop.permute.xlu0 %83
    %87 = vset.pattern.permute.xlu0 0
    %88 = vperm.xlu0 %87, %v57
    %v89 = vpop.permute.xlu0 %88
    %92 = vset.pattern.permute.xlu0 0
    %93 = vperm.xlu0 %92, %v58
    %v94 = vpop.permute.xlu0 %93
    %97 = vset.pattern.permute.xlu0 0
    %98 = vperm.xlu0 %97, %v59
    %v99 = vpop.permute.xlu0 %98
    %v102 = vlaneseq
    %v103 = vshrl.u32 %v102, 7
    %v104 = vsub.s32 0, %v103
    %v105 = vrot.slane %v60, %v104
    %v107 = vmul.f32 %v64, %v105
    %v108 = vmul.f32 %v69, %v105
    %v109 = vmul.f32 %v74, %v105
    %v110 = vmul.f32 %v79, %v105
    %v111 = vmul.f32 %v84, %v105
    %v112 = vmul.f32 %v89, %v105
    %v113 = vmul.f32 %v94, %v105
    %v114 = vmul.f32 %v99, %v105
    %v115 = vld [vmem:[%s3] sm:$0x1]
    %v117 = vlaneseq
    %v118 = vshrl.u32 %v117, 7
    %v119 = vsub.s32 0, %v118
    %v120 = vrot.slane %v115, %v119
    %v122 = vadd.f32 %v107, %v120
    %v123 = vadd.f32 %v108, %v120
    %v124 = vadd.f32 %v109, %v120
    %v125 = vadd.f32 %v110, %v120
    %v126 = vadd.f32 %v111, %v120
    %v127 = vadd.f32 %v112, %v120
    %v128 = vadd.f32 %v113, %v120
    %v129 = vadd.f32 %v114, %v120
    %v130 = vld [vmem:[#allocation2] sm:$0xff]
    %v131 = vld [vmem:[#allocation2 + $0x8] sm:$0xff]
    %v132 = vld [vmem:[#allocation2 + $0x10] sm:$0xff]
    %v133 = vld [vmem:[#allocation2 + $0x18] sm:$0xff]
    %v134 = vld [vmem:[#allocation2 + $0x20] sm:$0xff]
    %v135 = vld [vmem:[#allocation2 + $0x28] sm:$0xff]
    %v136 = vld [vmem:[#allocation2 + $0x30] sm:$0xff]
    %v137 = vld [vmem:[#allocation2 + $0x38] sm:$0xff]
    %v138 = vld [vmem:[#allocation2 + $0x40] sm:$0xff]
    %v139 = vld [vmem:[#allocation2 + $0x48] sm:$0xff]
    %v140 = vld [vmem:[#allocation2 + $0x50] sm:$0xff]
    %v141 = vld [vmem:[#allocation2 + $0x58] sm:$0xff]
    %v142 = vld [vmem:[#allocation2 + $0x60] sm:$0xff]
    %v143 = vld [vmem:[#allocation2 + $0x68] sm:$0xff]
    %v144 = vld [vmem:[#allocation2 + $0x70] sm:$0xff]
    %v145 = vld [vmem:[#allocation2 + $0x78] sm:$0xff]
    %146 = vmatprep.subr.mxu0 0.0
    %147 = vmatpush1.msra.mxu0 %v130
    %148 = vmatprep.subr.mxu0 0.0
    %149 = vmatpush1.msra.mxu0 %v131
    %150 = vmatprep.subr.mxu0 0.0
    %151 = vmatpush1.msra.mxu0 %v132
    %152 = vmatprep.subr.mxu0 0.0
    %153 = vmatpush1.msra.mxu0 %v133
    %154 = vmatprep.subr.mxu0 0.0
    %155 = vmatpush1.msra.mxu0 %v134
    %156 = vmatprep.subr.mxu0 0.0
    %157 = vmatpush1.msra.mxu0 %v135
    %158 = vmatprep.subr.mxu0 0.0
    %159 = vmatpush1.msra.mxu0 %v136
    %160 = vmatprep.subr.mxu0 0.0
    %161 = vmatpush1.msra.mxu0 %v137
    %162 = vmatprep.subr.mxu0 0.0
    %163 = vmatpush1.msra.mxu0 %v138
    %164 = vmatprep.subr.mxu0 0.0
    %165 = vmatpush1.msra.mxu0 %v139
    %166 = vmatprep.subr.mxu0 0.0
    %167 = vmatpush1.msra.mxu0 %v140
    %168 = vmatprep.subr.mxu0 0.0
    %169 = vmatpush1.msra.mxu0 %v141
    %170 = vmatprep.subr.mxu0 0.0
    %171 = vmatpush1.msra.mxu0 %v142
    %172 = vmatprep.subr.mxu0 0.0
    %173 = vmatpush1.msra.mxu0 %v143
    %174 = vmatprep.subr.mxu0 0.0
    %175 = vmatpush1.msra.mxu0 %v144
    %176 = vmatprep.subr.mxu0 0.0
    %177 = vmatpush1.msra.mxu0 %v145
    %178 = vmatprep.subr.mxu0 0.0
    %179 = vmatpush1.msra.mxu0 0.0
    %180 = vmatprep.subr.mxu0 0.0
    %181 = vmatpush1.msra.mxu0 0.0
    %182 = vmatprep.subr.mxu0 0.0
    %183 = vmatpush1.msra.mxu0 0.0
    %184 = vmatprep.subr.mxu0 0.0
    %185 = vmatpush1.msra.mxu0 0.0
    %186 = vmatprep.subr.mxu0 0.0
    %187 = vmatpush1.msra.mxu0 0.0
    %188 = vmatprep.subr.mxu0 0.0
    %189 = vmatpush1.msra.mxu0 0.0
    %190 = vmatprep.subr.mxu0 0.0
    %191 = vmatpush1.msra.mxu0 0.0
    %192 = vmatprep.subr.mxu0 0.0
    %193 = vmatpush1.msra.mxu0 0.0
    %194 = vmatprep.subr.mxu0 0.0
    %195 = vmatpush1.msra.mxu0 0.0
    %196 = vmatprep.subr.mxu0 0.0
    %197 = vmatpush1.msra.mxu0 0.0
    %198 = vmatprep.subr.mxu0 0.0
    %199 = vmatpush1.msra.mxu0 0.0
    %200 = vmatprep.subr.mxu0 0.0
    %201 = vmatpush1.msra.mxu0 0.0
    %202 = vmatprep.subr.mxu0 0.0
    %203 = vmatpush1.msra.mxu0 0.0
    %204 = vmatprep.subr.mxu0 0.0
    %205 = vmatpush1.msra.mxu0 0.0
    %206 = vmatprep.subr.mxu0 0.0
    %207 = vmatpush1.msra.mxu0 0.0
    %208 = vmatprep.subr.mxu0 0.0
    %209 = vmatpush1.msra.mxu0 0.0
    %210 = vmatprep.mubr.f32.mxu0 0.0
    %211 = vmatmul.mubr.f32.gmra.mrb[0].mxu0 0.0
    %v212 = vpop.f32.mrb[0].mxu0
    %v213 = vadd.f32 0.0, %v212
    %v214 = vpop.f32.mrb[0].mxu0
    %215 = vdwg.mxu0
    %v216 = vadd.f32 %v122, %v213
    %v217 = vtanh.pop %v216
    %218 = vmatprep.subr.mxu0 0.0
    %219 = vmatpush1.msra.mxu0 %v130
    %220 = vmatprep.subr.mxu0 0.0
    %221 = vmatpush1.msra.mxu0 %v131
    %222 = vmatprep.subr.mxu0 0.0
    %223 = vmatpush1.msra.mxu0 %v132
    %224 = vmatprep.subr.mxu0 0.0
    %225 = vmatpush1.msra.mxu0 %v133
    %226 = vmatprep.subr.mxu0 0.0
    %227 = vmatpush1.msra.mxu0 %v134
    %228 = vmatprep.subr.mxu0 0.0
    %229 = vmatpush1.msra.mxu0 %v135
    %230 = vmatprep.subr.mxu0 0.0
    %231 = vmatpush1.msra.mxu0 %v136
    %232 = vmatprep.subr.mxu0 0.0
    %233 = vmatpush1.msra.mxu0 %v137
    %234 = vmatprep.subr.mxu0 0.0
    %235 = vmatpush1.msra.mxu0 %v138
    %236 = vmatprep.subr.mxu0 0.0
    %237 = vmatpush1.msra.mxu0 %v139
    %238 = vmatprep.subr.mxu0 0.0
    %239 = vmatpush1.msra.mxu0 %v140
    %240 = vmatprep.subr.mxu0 0.0
    %241 = vmatpush1.msra.mxu0 %v141
    %242 = vmatprep.subr.mxu0 0.0
    %243 = vmatpush1.msra.mxu0 %v142
    %244 = vmatprep.subr.mxu0 0.0
    %245 = vmatpush1.msra.mxu0 %v143
    %246 = vmatprep.subr.mxu0 0.0
    %247 = vmatpush1.msra.mxu0 %v144
    %248 = vmatprep.subr.mxu0 0.0
    %249 = vmatpush1.msra.mxu0 %v145
    %250 = vmatprep.subr.mxu0 0.0
    %251 = vmatpush1.msra.mxu0 0.0
    %252 = vmatprep.subr.mxu0 0.0
    %253 = vmatpush1.msra.mxu0 0.0
    %254 = vmatprep.subr.mxu0 0.0
    %255 = vmatpush1.msra.mxu0 0.0
    %256 = vmatprep.subr.mxu0 0.0
    %257 = vmatpush1.msra.mxu0 0.0
    %258 = vmatprep.subr.mxu0 0.0
    %259 = vmatpush1.msra.mxu0 0.0
    %260 = vmatprep.subr.mxu0 0.0
    %261 = vmatpush1.msra.mxu0 0.0
    %262 = vmatprep.subr.mxu0 0.0
    %263 = vmatpush1.msra.mxu0 0.0
    %264 = vmatprep.subr.mxu0 0.0
    %265 = vmatpush1.msra.mxu0 0.0
    %266 = vmatprep.subr.mxu0 0.0
    %267 = vmatpush1.msra.mxu0 0.0
    %268 = vmatprep.subr.mxu0 0.0
    %269 = vmatpush1.msra.mxu0 0.0
    %270 = vmatprep.subr.mxu0 0.0
    %271 = vmatpush1.msra.mxu0 0.0
    %272 = vmatprep.subr.mxu0 0.0
    %273 = vmatpush1.msra.mxu0 0.0
    %274 = vmatprep.subr.mxu0 0.0
    %275 = vmatpush1.msra.mxu0 0.0
    %276 = vmatprep.subr.mxu0 0.0
    %277 = vmatpush1.msra.mxu0 0.0
    %278 = vmatprep.subr.mxu0 0.0
    %279 = vmatpush1.msra.mxu0 0.0
    %280 = vmatprep.subr.mxu0 0.0
    %281 = vmatpush1.msra.mxu0 0.0
    %282 = vmatprep.mubr.f32.mxu0 0.0
    %283 = vmatmul.mubr.f32.gmra.mrb[0].mxu0 %v217
    %v284 = vpop.f32.mrb[0].mxu0
    %v285 = vadd.f32 0.0, %v284
    %v286 = vpop.f32.mrb[0].mxu0
    %287 = vdwg.mxu0
    %v288 = vadd.f32 %v123, %v285
    %v289 = vtanh.pop %v288
    %290 = vmatprep.subr.mxu0 0.0
    %291 = vmatpush1.msra.mxu0 %v130
    %292 = vmatprep.subr.mxu0 0.0
    %293 = vmatpush1.msra.mxu0 %v131
    %294 = vmatprep.subr.mxu0 0.0
    %295 = vmatpush1.msra.mxu0 %v132
    %296 = vmatprep.subr.mxu0 0.0
    %297 = vmatpush1.msra.mxu0 %v133
    %298 = vmatprep.subr.mxu0 0.0
    %299 = vmatpush1.msra.mxu0 %v134
    %300 = vmatprep.subr.mxu0 0.0
    %301 = vmatpush1.msra.mxu0 %v135
    %302 = vmatprep.subr.mxu0 0.0
    %303 = vmatpush1.msra.mxu0 %v136
    %304 = vmatprep.subr.mxu0 0.0
    %305 = vmatpush1.msra.mxu0 %v137
    %306 = vmatprep.subr.mxu0 0.0
    %307 = vmatpush1.msra.mxu0 %v138
    %308 = vmatprep.subr.mxu0 0.0
    %309 = vmatpush1.msra.mxu0 %v139
    %310 = vmatprep.subr.mxu0 0.0
    %311 = vmatpush1.msra.mxu0 %v140
    %312 = vmatprep.subr.mxu0 0.0
    %313 = vmatpush1.msra.mxu0 %v141
    %314 = vmatprep.subr.mxu0 0.0
    %315 = vmatpush1.msra.mxu0 %v142
    %316 = vmatprep.subr.mxu0 0.0
    %317 = vmatpush1.msra.mxu0 %v143
    %318 = vmatprep.subr.mxu0 0.0
    %319 = vmatpush1.msra.mxu0 %v144
    %320 = vmatprep.subr.mxu0 0.0
    %321 = vmatpush1.msra.mxu0 %v145
    %322 = vmatprep.subr.mxu0 0.0
    %323 = vmatpush1.msra.mxu0 0.0
    %324 = vmatprep.subr.mxu0 0.0
    %325 = vmatpush1.msra.mxu0 0.0
    %326 = vmatprep.subr.mxu0 0.0
    %327 = vmatpush1.msra.mxu0 0.0
    %328 = vmatprep.subr.mxu0 0.0
    %329 = vmatpush1.msra.mxu0 0.0
    %330 = vmatprep.subr.mxu0 0.0
    %331 = vmatpush1.msra.mxu0 0.0
    %332 = vmatprep.subr.mxu0 0.0
    %333 = vmatpush1.msra.mxu0 0.0
    %334 = vmatprep.subr.mxu0 0.0
    %335 = vmatpush1.msra.mxu0 0.0
    %336 = vmatprep.subr.mxu0 0.0
    %337 = vmatpush1.msra.mxu0 0.0
    %338 = vmatprep.subr.mxu0 0.0
    %339 = vmatpush1.msra.mxu0 0.0
    %340 = vmatprep.subr.mxu0 0.0
    %341 = vmatpush1.msra.mxu0 0.0
    %342 = vmatprep.subr.mxu0 0.0
    %343 = vmatpush1.msra.mxu0 0.0
    %344 = vmatprep.subr.mxu0 0.0
    %345 = vmatpush1.msra.mxu0 0.0
    %346 = vmatprep.subr.mxu0 0.0
    %347 = vmatpush1.msra.mxu0 0.0
    %348 = vmatprep.subr.mxu0 0.0
    %349 = vmatpush1.msra.mxu0 0.0
    %350 = vmatprep.subr.mxu0 0.0
    %351 = vmatpush1.msra.mxu0 0.0
    %352 = vmatprep.subr.mxu0 0.0
    %353 = vmatpush1.msra.mxu0 0.0
    %354 = vmatprep.mubr.f32.mxu0 0.0
    %355 = vmatmul.mubr.f32.gmra.mrb[0].mxu0 %v289
    %v356 = vpop.f32.mrb[0].mxu0
    %v357 = vadd.f32 0.0, %v356
    %v358 = vpop.f32.mrb[0].mxu0
    %359 = vdwg.mxu0
    %v360 = vadd.f32 %v124, %v357
    %v361 = vtanh.pop %v360
    %362 = vmatprep.subr.mxu0 0.0
    %363 = vmatpush1.msra.mxu0 %v130
    %364 = vmatprep.subr.mxu0 0.0
    %365 = vmatpush1.msra.mxu0 %v131
    %366 = vmatprep.subr.mxu0 0.0
    %367 = vmatpush1.msra.mxu0 %v132
    %368 = vmatprep.subr.mxu0 0.0
    %369 = vmatpush1.msra.mxu0 %v133
    %370 = vmatprep.subr.mxu0 0.0
    %371 = vmatpush1.msra.mxu0 %v134
    %372 = vmatprep.subr.mxu0 0.0
    %373 = vmatpush1.msra.mxu0 %v135
    %374 = vmatprep.subr.mxu0 0.0
    %375 = vmatpush1.msra.mxu0 %v136
    %376 = vmatprep.subr.mxu0 0.0
    %377 = vmatpush1.msra.mxu0 %v137
    %378 = vmatprep.subr.mxu0 0.0
    %379 = vmatpush1.msra.mxu0 %v138
    %380 = vmatprep.subr.mxu0 0.0
    %381 = vmatpush1.msra.mxu0 %v139
    %382 = vmatprep.subr.mxu0 0.0
    %383 = vmatpush1.msra.mxu0 %v140
    %384 = vmatprep.subr.mxu0 0.0
    %385 = vmatpush1.msra.mxu0 %v141
    %386 = vmatprep.subr.mxu0 0.0
    %387 = vmatpush1.msra.mxu0 %v142
    %388 = vmatprep.subr.mxu0 0.0
    %389 = vmatpush1.msra.mxu0 %v143
    %390 = vmatprep.subr.mxu0 0.0
    %391 = vmatpush1.msra.mxu0 %v144
    %392 = vmatprep.subr.mxu0 0.0
    %393 = vmatpush1.msra.mxu0 %v145
    %394 = vmatprep.subr.mxu0 0.0
    %395 = vmatpush1.msra.mxu0 0.0
    %396 = vmatprep.subr.mxu0 0.0
    %397 = vmatpush1.msra.mxu0 0.0
    %398 = vmatprep.subr.mxu0 0.0
    %399 = vmatpush1.msra.mxu0 0.0
    %400 = vmatprep.subr.mxu0 0.0
    %401 = vmatpush1.msra.mxu0 0.0
    %402 = vmatprep.subr.mxu0 0.0
    %403 = vmatpush1.msra.mxu0 0.0
    %404 = vmatprep.subr.mxu0 0.0
    %405 = vmatpush1.msra.mxu0 0.0
    %406 = vmatprep.subr.mxu0 0.0
    %407 = vmatpush1.msra.mxu0 0.0
    %408 = vmatprep.subr.mxu0 0.0
    %409 = vmatpush1.msra.mxu0 0.0
    %410 = vmatprep.subr.mxu0 0.0
    %411 = vmatpush1.msra.mxu0 0.0
    %412 = vmatprep.subr.mxu0 0.0
    %413 = vmatpush1.msra.mxu0 0.0
    %414 = vmatprep.subr.mxu0 0.0
    %415 = vmatpush1.msra.mxu0 0.0
    %416 = vmatprep.subr.mxu0 0.0
    %417 = vmatpush1.msra.mxu0 0.0
    %418 = vmatprep.subr.mxu0 0.0
    %419 = vmatpush1.msra.mxu0 0.0
    %420 = vmatprep.subr.mxu0 0.0
    %421 = vmatpush1.msra.mxu0 0.0
    %422 = vmatprep.subr.mxu0 0.0
    %423 = vmatpush1.msra.mxu0 0.0
    %424 = vmatprep.subr.mxu0 0.0
    %425 = vmatpush1.msra.mxu0 0.0
    %426 = vmatprep.mubr.f32.mxu0 0.0
    %427 = vmatmul.mubr.f32.gmra.mrb[0].mxu0 %v361
    %v428 = vpop.f32.mrb[0].mxu0
    %v429 = vadd.f32 0.0, %v428
    %v430 = vpop.f32.mrb[0].mxu0
    %431 = vdwg.mxu0
    %v432 = vadd.f32 %v125, %v429
    %v433 = vtanh.pop %v432
    %434 = vmatprep.subr.mxu0 0.0
    %435 = vmatpush1.msra.mxu0 %v130
    %436 = vmatprep.subr.mxu0 0.0
    %437 = vmatpush1.msra.mxu0 %v131
    %438 = vmatprep.subr.mxu0 0.0
    %439 = vmatpush1.msra.mxu0 %v132
    %440 = vmatprep.subr.mxu0 0.0
    %441 = vmatpush1.msra.mxu0 %v133
    %442 = vmatprep.subr.mxu0 0.0
    %443 = vmatpush1.msra.mxu0 %v134
    %444 = vmatprep.subr.mxu0 0.0
    %445 = vmatpush1.msra.mxu0 %v135
    %446 = vmatprep.subr.mxu0 0.0
    %447 = vmatpush1.msra.mxu0 %v136
    %448 = vmatprep.subr.mxu0 0.0
    %449 = vmatpush1.msra.mxu0 %v137
    %450 = vmatprep.subr.mxu0 0.0
    %451 = vmatpush1.msra.mxu0 %v138
    %452 = vmatprep.subr.mxu0 0.0
    %453 = vmatpush1.msra.mxu0 %v139
    %454 = vmatprep.subr.mxu0 0.0
    %455 = vmatpush1.msra.mxu0 %v140
    %456 = vmatprep.subr.mxu0 0.0
    %457 = vmatpush1.msra.mxu0 %v141
    %458 = vmatprep.subr.mxu0 0.0
    %459 = vmatpush1.msra.mxu0 %v142
    %460 = vmatprep.subr.mxu0 0.0
    %461 = vmatpush1.msra.mxu0 %v143
    %462 = vmatprep.subr.mxu0 0.0
    %463 = vmatpush1.msra.mxu0 %v144
    %464 = vmatprep.subr.mxu0 0.0
    %465 = vmatpush1.msra.mxu0 %v145
    %466 = vmatprep.subr.mxu0 0.0
    %467 = vmatpush1.msra.mxu0 0.0
    %468 = vmatprep.subr.mxu0 0.0
    %469 = vmatpush1.msra.mxu0 0.0
    %470 = vmatprep.subr.mxu0 0.0
    %471 = vmatpush1.msra.mxu0 0.0
    %472 = vmatprep.subr.mxu0 0.0
    %473 = vmatpush1.msra.mxu0 0.0
    %474 = vmatprep.subr.mxu0 0.0
    %475 = vmatpush1.msra.mxu0 0.0
    %476 = vmatprep.subr.mxu0 0.0
    %477 = vmatpush1.msra.mxu0 0.0
    %478 = vmatprep.subr.mxu0 0.0
    %479 = vmatpush1.msra.mxu0 0.0
    %480 = vmatprep.subr.mxu0 0.0
    %481 = vmatpush1.msra.mxu0 0.0
    %482 = vmatprep.subr.mxu0 0.0
    %483 = vmatpush1.msra.mxu0 0.0
    %484 = vmatprep.subr.mxu0 0.0
    %485 = vmatpush1.msra.mxu0 0.0
    %486 = vmatprep.subr.mxu0 0.0
    %487 = vmatpush1.msra.mxu0 0.0
    %488 = vmatprep.subr.mxu0 0.0
    %489 = vmatpush1.msra.mxu0 0.0
    %490 = vmatprep.subr.mxu0 0.0
    %491 = vmatpush1.msra.mxu0 0.0
    %492 = vmatprep.subr.mxu0 0.0
    %493 = vmatpush1.msra.mxu0 0.0
    %494 = vmatprep.subr.mxu0 0.0
    %495 = vmatpush1.msra.mxu0 0.0
    %496 = vmatprep.subr.mxu0 0.0
    %497 = vmatpush1.msra.mxu0 0.0
    %498 = vmatprep.mubr.f32.mxu0 0.0
    %499 = vmatmul.mubr.f32.gmra.mrb[0].mxu0 %v433
    %v500 = vpop.f32.mrb[0].mxu0
    %v501 = vadd.f32 0.0, %v500
    %v502 = vpop.f32.mrb[0].mxu0
    %503 = vdwg.mxu0
    %v504 = vadd.f32 %v126, %v501
    %v505 = vtanh.pop %v504
    %506 = vmatprep.subr.mxu0 0.0
    %507 = vmatpush1.msra.mxu0 %v130
    %508 = vmatprep.subr.mxu0 0.0
    %509 = vmatpush1.msra.mxu0 %v131
    %510 = vmatprep.subr.mxu0 0.0
    %511 = vmatpush1.msra.mxu0 %v132
    %512 = vmatprep.subr.mxu0 0.0
    %513 = vmatpush1.msra.mxu0 %v133
    %514 = vmatprep.subr.mxu0 0.0
    %515 = vmatpush1.msra.mxu0 %v134
    %516 = vmatprep.subr.mxu0 0.0
    %517 = vmatpush1.msra.mxu0 %v135
    %518 = vmatprep.subr.mxu0 0.0
    %519 = vmatpush1.msra.mxu0 %v136
    %520 = vmatprep.subr.mxu0 0.0
    %521 = vmatpush1.msra.mxu0 %v137
    %522 = vmatprep.subr.mxu0 0.0
    %523 = vmatpush1.msra.mxu0 %v138
    %524 = vmatprep.subr.mxu0 0.0
    %525 = vmatpush1.msra.mxu0 %v139
    %526 = vmatprep.subr.mxu0 0.0
    %527 = vmatpush1.msra.mxu0 %v140
    %528 = vmatprep.subr.mxu0 0.0
    %529 = vmatpush1.msra.mxu0 %v141
    %530 = vmatprep.subr.mxu0 0.0
    %531 = vmatpush1.msra.mxu0 %v142
    %532 = vmatprep.subr.mxu0 0.0
    %533 = vmatpush1.msra.mxu0 %v143
    %534 = vmatprep.subr.mxu0 0.0
    %535 = vmatpush1.msra.mxu0 %v144
    %536 = vmatprep.subr.mxu0 0.0
    %537 = vmatpush1.msra.mxu0 %v145
    %538 = vmatprep.subr.mxu0 0.0
    %539 = vmatpush1.msra.mxu0 0.0
    %540 = vmatprep.subr.mxu0 0.0
    %541 = vmatpush1.msra.mxu0 0.0
    %542 = vmatprep.subr.mxu0 0.0
    %543 = vmatpush1.msra.mxu0 0.0
    %544 = vmatprep.subr.mxu0 0.0
    %545 = vmatpush1.msra.mxu0 0.0
    %546 = vmatprep.subr.mxu0 0.0
    %547 = vmatpush1.msra.mxu0 0.0
    %548 = vmatprep.subr.mxu0 0.0
    %549 = vmatpush1.msra.mxu0 0.0
    %550 = vmatprep.subr.mxu0 0.0
    %551 = vmatpush1.msra.mxu0 0.0
    %552 = vmatprep.subr.mxu0 0.0
    %553 = vmatpush1.msra.mxu0 0.0
    %554 = vmatprep.subr.mxu0 0.0
    %555 = vmatpush1.msra.mxu0 0.0
    %556 = vmatprep.subr.mxu0 0.0
    %557 = vmatpush1.msra.mxu0 0.0
    %558 = vmatprep.subr.mxu0 0.0
    %559 = vmatpush1.msra.mxu0 0.0
    %560 = vmatprep.subr.mxu0 0.0
    %561 = vmatpush1.msra.mxu0 0.0
    %562 = vmatprep.subr.mxu0 0.0
    %563 = vmatpush1.msra.mxu0 0.0
    %564 = vmatprep.subr.mxu0 0.0
    %565 = vmatpush1.msra.mxu0 0.0
    %566 = vmatprep.subr.mxu0 0.0
    %567 = vmatpush1.msra.mxu0 0.0
    %568 = vmatprep.subr.mxu0 0.0
    %569 = vmatpush1.msra.mxu0 0.0
    %570 = vmatprep.mubr.f32.mxu0 0.0
    %571 = vmatmul.mubr.f32.gmra.mrb[0].mxu0 %v505
    %v572 = vpop.f32.mrb[0].mxu0
    %v573 = vadd.f32 0.0, %v572
    %v574 = vpop.f32.mrb[0].mxu0
    %575 = vdwg.mxu0
    %v576 = vadd.f32 %v127, %v573
    %v577 = vtanh.pop %v576
    %578 = vmatprep.subr.mxu0 0.0
    %579 = vmatpush1.msra.mxu0 %v130
    %580 = vmatprep.subr.mxu0 0.0
    %581 = vmatpush1.msra.mxu0 %v131
    %582 = vmatprep.subr.mxu0 0.0
    %583 = vmatpush1.msra.mxu0 %v132
    %584 = vmatprep.subr.mxu0 0.0
    %585 = vmatpush1.msra.mxu0 %v133
    %586 = vmatprep.subr.mxu0 0.0
    %587 = vmatpush1.msra.mxu0 %v134
    %588 = vmatprep.subr.mxu0 0.0
    %589 = vmatpush1.msra.mxu0 %v135
    %590 = vmatprep.subr.mxu0 0.0
    %591 = vmatpush1.msra.mxu0 %v136
    %592 = vmatprep.subr.mxu0 0.0
    %593 = vmatpush1.msra.mxu0 %v137
    %594 = vmatprep.subr.mxu0 0.0
    %595 = vmatpush1.msra.mxu0 %v138
    %596 = vmatprep.subr.mxu0 0.0
    %597 = vmatpush1.msra.mxu0 %v139
    %598 = vmatprep.subr.mxu0 0.0
    %599 = vmatpush1.msra.mxu0 %v140
    %600 = vmatprep.subr.mxu0 0.0
    %601 = vmatpush1.msra.mxu0 %v141
    %602 = vmatprep.subr.mxu0 0.0
    %603 = vmatpush1.msra.mxu0 %v142
    %604 = vmatprep.subr.mxu0 0.0
    %605 = vmatpush1.msra.mxu0 %v143
    %606 = vmatprep.subr.mxu0 0.0
    %607 = vmatpush1.msra.mxu0 %v144
    %608 = vmatprep.subr.mxu0 0.0
    %609 = vmatpush1.msra.mxu0 %v145
    %610 = vmatprep.subr.mxu0 0.0
    %611 = vmatpush1.msra.mxu0 0.0
    %612 = vmatprep.subr.mxu0 0.0
    %613 = vmatpush1.msra.mxu0 0.0
    %614 = vmatprep.subr.mxu0 0.0
    %615 = vmatpush1.msra.mxu0 0.0
    %616 = vmatprep.subr.mxu0 0.0
    %617 = vmatpush1.msra.mxu0 0.0
    %618 = vmatprep.subr.mxu0 0.0
    %619 = vmatpush1.msra.mxu0 0.0
    %620 = vmatprep.subr.mxu0 0.0
    %621 = vmatpush1.msra.mxu0 0.0
    %622 = vmatprep.subr.mxu0 0.0
    %623 = vmatpush1.msra.mxu0 0.0
    %624 = vmatprep.subr.mxu0 0.0
    %625 = vmatpush1.msra.mxu0 0.0
    %626 = vmatprep.subr.mxu0 0.0
    %627 = vmatpush1.msra.mxu0 0.0
    %628 = vmatprep.subr.mxu0 0.0
    %629 = vmatpush1.msra.mxu0 0.0
    %630 = vmatprep.subr.mxu0 0.0
    %631 = vmatpush1.msra.mxu0 0.0
    %632 = vmatprep.subr.mxu0 0.0
    %633 = vmatpush1.msra.mxu0 0.0
    %634 = vmatprep.subr.mxu0 0.0
    %635 = vmatpush1.msra.mxu0 0.0
    %636 = vmatprep.subr.mxu0 0.0
    %637 = vmatpush1.msra.mxu0 0.0
    %638 = vmatprep.subr.mxu0 0.0
    %639 = vmatpush1.msra.mxu0 0.0
    %640 = vmatprep.subr.mxu0 0.0
    %641 = vmatpush1.msra.mxu0 0.0
    %642 = vmatprep.mubr.f32.mxu0 0.0
    %643 = vmatmul.mubr.f32.gmra.mrb[0].mxu0 %v577
    %v644 = vpop.f32.mrb[0].mxu0
    %v645 = vadd.f32 0.0, %v644
    %v646 = vpop.f32.mrb[0].mxu0
    %647 = vdwg.mxu0
    %v648 = vadd.f32 %v128, %v645
    %v649 = vtanh.pop %v648
    %650 = vmatprep.subr.mxu0 0.0
    %651 = vmatpush1.msra.mxu0 %v130
    %652 = vmatprep.subr.mxu0 0.0
    %653 = vmatpush1.msra.mxu0 %v131
    %654 = vmatprep.subr.mxu0 0.0
    %655 = vmatpush1.msra.mxu0 %v132
    %656 = vmatprep.subr.mxu0 0.0
    %657 = vmatpush1.msra.mxu0 %v133
    %658 = vmatprep.subr.mxu0 0.0
    %659 = vmatpush1.msra.mxu0 %v134
    %660 = vmatprep.subr.mxu0 0.0
    %661 = vmatpush1.msra.mxu0 %v135
    %662 = vmatprep.subr.mxu0 0.0
    %663 = vmatpush1.msra.mxu0 %v136
    %664 = vmatprep.subr.mxu0 0.0
    %665 = vmatpush1.msra.mxu0 %v137
    %666 = vmatprep.subr.mxu0 0.0
    %667 = vmatpush1.msra.mxu0 %v138
    %668 = vmatprep.subr.mxu0 0.0
    %669 = vmatpush1.msra.mxu0 %v139
    %670 = vmatprep.subr.mxu0 0.0
    %671 = vmatpush1.msra.mxu0 %v140
    %672 = vmatprep.subr.mxu0 0.0
    %673 = vmatpush1.msra.mxu0 %v141
    %674 = vmatprep.subr.mxu0 0.0
    %675 = vmatpush1.msra.mxu0 %v142
    %676 = vmatprep.subr.mxu0 0.0
    %677 = vmatpush1.msra.mxu0 %v143
    %678 = vmatprep.subr.mxu0 0.0
    %679 = vmatpush1.msra.mxu0 %v144
    %680 = vmatprep.subr.mxu0 0.0
    %681 = vmatpush1.msra.mxu0 %v145
    %682 = vmatprep.subr.mxu0 0.0
    %683 = vmatpush1.msra.mxu0 0.0
    %684 = vmatprep.subr.mxu0 0.0
    %685 = vmatpush1.msra.mxu0 0.0
    %686 = vmatprep.subr.mxu0 0.0
    %687 = vmatpush1.msra.mxu0 0.0
    %688 = vmatprep.subr.mxu0 0.0
    %689 = vmatpush1.msra.mxu0 0.0
    %690 = vmatprep.subr.mxu0 0.0
    %691 = vmatpush1.msra.mxu0 0.0
    %692 = vmatprep.subr.mxu0 0.0
    %693 = vmatpush1.msra.mxu0 0.0
    %694 = vmatprep.subr.mxu0 0.0
    %695 = vmatpush1.msra.mxu0 0.0
    %696 = vmatprep.subr.mxu0 0.0
    %697 = vmatpush1.msra.mxu0 0.0
    %698 = vmatprep.subr.mxu0 0.0
    %699 = vmatpush1.msra.mxu0 0.0
    %700 = vmatprep.subr.mxu0 0.0
    %701 = vmatpush1.msra.mxu0 0.0
    %702 = vmatprep.subr.mxu0 0.0
    %703 = vmatpush1.msra.mxu0 0.0
    %704 = vmatprep.subr.mxu0 0.0
    %705 = vmatpush1.msra.mxu0 0.0
    %706 = vmatprep.subr.mxu0 0.0
    %707 = vmatpush1.msra.mxu0 0.0
    %708 = vmatprep.subr.mxu0 0.0
    %709 = vmatpush1.msra.mxu0 0.0
    %710 = vmatprep.subr.mxu0 0.0
    %711 = vmatpush1.msra.mxu0 0.0
    %712 = vmatprep.subr.mxu0 0.0
    %713 = vmatpush1.msra.mxu0 0.0
    %714 = vmatprep.mubr.f32.mxu0 0.0
    %715 = vmatmul.mubr.f32.gmra.mrb[0].mxu0 %v649
    %v716 = vpop.f32.mrb[0].mxu0
    %v717 = vadd.f32 0.0, %v716
    %v718 = vpop.f32.mrb[0].mxu0
    %719 = vdwg.mxu0
    %v720 = vadd.f32 %v129, %v717
    %v721 = vtanh.pop %v720
    %v722 = vld [vmem:[#allocation5] sm:$0xff]
    %v723 = vld [vmem:[#allocation5 + $0x8] sm:$0xff]
    %v724 = vld [vmem:[#allocation5 + $0x10] sm:$0xff]
    %v725 = vld [vmem:[#allocation5 + $0x18] sm:$0xff]
    %v726 = vld [vmem:[#allocation5 + $0x20] sm:$0xff]
    %v727 = vld [vmem:[#allocation5 + $0x28] sm:$0xff]
    %v728 = vld [vmem:[#allocation5 + $0x30] sm:$0xff]
    %v729 = vld [vmem:[#allocation5 + $0x38] sm:$0xff]
    %v730 = vld [vmem:[#allocation5 + $0x40] sm:$0xff]
    %v731 = vld [vmem:[#allocation5 + $0x48] sm:$0xff]
    %v732 = vld [vmem:[#allocation5 + $0x50] sm:$0xff]
    %v733 = vld [vmem:[#allocation5 + $0x58] sm:$0xff]
    %v734 = vld [vmem:[#allocation5 + $0x60] sm:$0xff]
    %v735 = vld [vmem:[#allocation5 + $0x68] sm:$0xff]
    %v736 = vld [vmem:[#allocation5 + $0x70] sm:$0xff]
    %v737 = vld [vmem:[#allocation5 + $0x78] sm:$0xff]
    %v738 = vld [vmem:[%s5] sm:$0x1]
    %v740 = vlaneseq
    %v741 = vshrl.u32 %v740, 7
    %v742 = vsub.s32 0, %v741
    %v743 = vrot.slane %v738, %v742
    %745 = vmatprep.subr.mxu0 0.0
    %746 = vmatpush1.msra.mxu0 %v722
    %747 = vmatprep.subr.mxu0 0.0
    %748 = vmatpush1.msra.mxu0 %v723
    %749 = vmatprep.subr.mxu0 0.0
    %750 = vmatpush1.msra.mxu0 %v724
    %751 = vmatprep.subr.mxu0 0.0
    %752 = vmatpush1.msra.mxu0 %v725
    %753 = vmatprep.subr.mxu0 0.0
    %754 = vmatpush1.msra.mxu0 %v726
    %755 = vmatprep.subr.mxu0 0.0
    %756 = vmatpush1.msra.mxu0 %v727
    %757 = vmatprep.subr.mxu0 0.0
    %758 = vmatpush1.msra.mxu0 %v728
    %759 = vmatprep.subr.mxu0 0.0
    %760 = vmatpush1.msra.mxu0 %v729
    %761 = vmatprep.subr.mxu0 0.0
    %762 = vmatpush1.msra.mxu0 %v730
    %763 = vmatprep.subr.mxu0 0.0
    %764 = vmatpush1.msra.mxu0 %v731
    %765 = vmatprep.subr.mxu0 0.0
    %766 = vmatpush1.msra.mxu0 %v732
    %767 = vmatprep.subr.mxu0 0.0
    %768 = vmatpush1.msra.mxu0 %v733
    %769 = vmatprep.subr.mxu0 0.0
    %770 = vmatpush1.msra.mxu0 %v734
    %771 = vmatprep.subr.mxu0 0.0
    %772 = vmatpush1.msra.mxu0 %v735
    %773 = vmatprep.subr.mxu0 0.0
    %774 = vmatpush1.msra.mxu0 %v736
    %775 = vmatprep.subr.mxu0 0.0
    %776 = vmatpush1.msra.mxu0 %v737
    %777 = vmatprep.subr.mxu0 0.0
    %778 = vmatpush1.msra.mxu0 0.0
    %779 = vmatprep.subr.mxu0 0.0
    %780 = vmatpush1.msra.mxu0 0.0
    %781 = vmatprep.subr.mxu0 0.0
    %782 = vmatpush1.msra.mxu0 0.0
    %783 = vmatprep.subr.mxu0 0.0
    %784 = vmatpush1.msra.mxu0 0.0
    %785 = vmatprep.subr.mxu0 0.0
    %786 = vmatpush1.msra.mxu0 0.0
    %787 = vmatprep.subr.mxu0 0.0
    %788 = vmatpush1.msra.mxu0 0.0
    %789 = vmatprep.subr.mxu0 0.0
    %790 = vmatpush1.msra.mxu0 0.0
    %791 = vmatprep.subr.mxu0 0.0
    %792 = vmatpush1.msra.mxu0 0.0
    %793 = vmatprep.subr.mxu0 0.0
    %794 = vmatpush1.msra.mxu0 0.0
    %795 = vmatprep.subr.mxu0 0.0
    %796 = vmatpush1.msra.mxu0 0.0
    %797 = vmatprep.subr.mxu0 0.0
    %798 = vmatpush1.msra.mxu0 0.0
    %799 = vmatprep.subr.mxu0 0.0
    %800 = vmatpush1.msra.mxu0 0.0
    %801 = vmatprep.subr.mxu0 0.0
    %802 = vmatpush1.msra.mxu0 0.0
    %803 = vmatprep.subr.mxu0 0.0
    %804 = vmatpush1.msra.mxu0 0.0
    %805 = vmatprep.subr.mxu0 0.0
    %806 = vmatpush1.msra.mxu0 0.0
    %807 = vmatprep.subr.mxu0 0.0
    %808 = vmatpush1.msra.mxu0 0.0
    %809 = vmatprep.mubr.f32.mxu0 0.0
    %810 = vmatmul.mubr.f32.gmra.mrb[0].mxu0 %v721
    %v811 = vpop.f32.mrb[0].mxu0
    %v812 = vadd.f32 %v743, %v811
    %v813 = vpop.f32.mrb[0].mxu0
    %814 = vdwg.mxu0
    %815 = vst [vmem:[#allocation7] sm:$0xff] %v812
    // Predicated region
    $region34: #{tpu_custom_call.1} parent=1 // pred_check
      _
    $region35: #{tpu_custom_call.1} parent=1 // pred_check_branch
      %817 = sbr.rel (0) target = $region37
    $region36: #{tpu_custom_call.1} parent=1 // pred_region
      %s819 = ssub.s32 128, 128
      %820 = vsyncadd [#allocation4], %s819
      %s822 = sshll.u32 [#allocation7], 4
      %s823 = int_to_ptr.vmem [resolvable:$true] %s822
      %825 = dma.vmem_to_hbm [thread:$0]  %s823, 128, %s6, [#allocation4]
    $region37: #{tpu_custom_call.1} parent=1 // pred_fallthru
      _
    // Predicated region
    $region38: #{tpu_custom_call.1} parent=1 // pred_check
      _
    $region39: #{tpu_custom_call.1} parent=1 // pred_check_branch
      %827 = sbr.rel (0) target = $region41
    $region40: #{tpu_custom_call.1} parent=1 // pred_region
      %828 = dma.done [#allocation4], 128
    $region41: #{tpu_custom_call.1} parent=1 // pred_fallthru
      _
    %829 = vsyncpa [#allocation3], 1
    %830 = vsyncpa [#allocation6], 1
    %831 = vsyncpa [#allocation4], 1

</llo_original>
